<compile_context>
chip_gen: v5e
topology: v5e:2x2
jax: 0.10.0
libtpu: 0.0.40
codegen_flags: <defaults>
</compile_context>

<pallas_src>
import functools

import jax
import jax.numpy as jnp
from jax.experimental import pallas as pl
from jax.experimental.pallas import tpu as pltpu


LANE = 128            # pad output features (N) to the vreg lane width
SUBLANE_BF16 = 16     # pad the contraction dim (K) to the bf16 sublane pack
VMEM_LIMIT = 32 * 1024 * 1024   # safe on v5e/v6e/v7x; tiles below stay well under


def _round_up(x, m):
    return ((x + m - 1) // m) * m


# ---------------------------------------------------------------------------
# Pallas kernels
# ---------------------------------------------------------------------------
def _mm_bias_act_kernel(x_ref, w_ref, b_ref, o_ref, *, relu):
    """o = act(x @ w + b).  bf16 MXU inputs, f32 accumulate / bias / ReLU."""
    acc = jnp.dot(x_ref[...], w_ref[...], preferred_element_type=jnp.float32)
    acc = acc + b_ref[...]                      # b is (1, Np): broadcasts over rows
    if relu:
        acc = jnp.maximum(acc, 0.0)
    o_ref[...] = acc.astype(o_ref.dtype)


def _mlp_head_kernel(x_ref, *refs, n_layers):
    """Fused MLP head: hidden layers with ReLU, last layer linear.

    refs = (w0, b0, w1, b1, ..., out_ref).  The hidden intermediates stay in
    registers/VMEM (padded to 128 lanes); padded lanes are exactly zero.
    """
    o_ref = refs[-1]
    h = x_ref[...]                              # bf16 (tm, K0p)
    for li in range(n_layers):
        w = refs[2 * li][...]                   # bf16 (Kp, Np), zero-padded
        b = refs[2 * li + 1][...]               # f32  (1, Np), zero-padded
        acc = jnp.dot(h.astype(jnp.bfloat16), w,
                      preferred_element_type=jnp.float32) + b
        if li < n_layers - 1:
            acc = jnp.maximum(acc, 0.0)
        h = acc
    o_ref[...] = h.astype(o_ref.dtype)


# ---------------------------------------------------------------------------
# Wrappers (tiling, padding, pallas_call plumbing)
# ---------------------------------------------------------------------------
def _mm_compiler_params():
    return pltpu.CompilerParams(
        dimension_semantics=("parallel",),      # shard the M axis across cores (v7x)
        vmem_limit_bytes=VMEM_LIMIT)


def matmul_bias_act(x, w_p, b_p, *, n_true, relu, out_dtype=jnp.float32,
                    tm_max=512):
    """x: [M, K] float, w_p: [Kp, Np] bf16 (zero-padded), b_p: [1, Np] f32.

    Returns act(x @ w + b)[:, :n_true] as [M, n_true] in `out_dtype`.
    """
    M, K = x.shape
    Kp, Np = w_p.shape
    assert K <= Kp and n_true <= Np

    tm = min(tm_max, _round_up(M, 8))
    Mp = _round_up(M, tm)                       # grid divides exactly (no partial tiles)

    x_p = x.astype(jnp.bfloat16)
    if (Mp, Kp) != (M, K):
        x_p = jnp.pad(x_p, ((0, Mp - M), (0, Kp - K)))

    out_bytes = Mp * Np * jnp.dtype(out_dtype).itemsize
    out = pl.pallas_call(
        functools.partial(_mm_bias_act_kernel, relu=relu),
        grid=(Mp // tm,),
        in_specs=[
            pl.BlockSpec((tm, Kp), lambda i: (i, 0)),    # x streams over M
            pl.BlockSpec((Kp, Np), lambda i: (0, 0)),    # w resident in VMEM
            pl.BlockSpec((1, Np), lambda i: (0, 0)),     # b resident in VMEM
        ],
        out_specs=pl.BlockSpec((tm, Np), lambda i: (i, 0)),
        out_shape=jax.ShapeDtypeStruct((Mp, Np), out_dtype),
        compiler_params=_mm_compiler_params(),
        cost_estimate=pl.CostEstimate(
            flops=2 * Mp * Kp * Np, transcendentals=0,
            bytes_accessed=int(Mp * Kp * 2 + Kp * Np * 2 + Np * 4 + out_bytes)),
    )(x_p, w_p, b_p)
    return out[:M, :n_true]


def conv2d_relu(x_nhwc, w_p, b_p, *, ksize, stride, pad, cout, out_dtype):
    """x_nhwc: [N,H,W,Cin]; w_p: [Kp, Np] bf16 with rows ordered (kh, kw, cin).

    Returns ReLU(conv2d(x)) as [N, Ho, Wo, cout].
    """
    n, _, _, cin = x_nhwc.shape
    xp = jnp.pad(x_nhwc, ((0, 0), (pad, pad), (pad, pad), (0, 0)))
    _, hp, wp, _ = xp.shape
    ho = (hp - ksize) // stride + 1
    wo = (wp - ksize) // stride + 1

    # im2col patch gather: plain-JAX glue (bf16, fused with pad/cast by XLA).
    # TODO(synk): move this patch extraction into the kernel (per-tile DMA).
    patches = []
    for i in range(ksize):
        for j in range(ksize):
            patches.append(
                xp[:, i:i + (ho - 1) * stride + 1:stride,
                      j:j + (wo - 1) * stride + 1:stride, :])
    # row ordering (kh*kw, cin) matches w.reshape(kh*kw*cin, cout)
    cols = jnp.stack(patches, axis=3).reshape(n * ho * wo, ksize * ksize * cin)

    out = matmul_bias_act(cols, w_p, b_p, n_true=cout, relu=True,
                          out_dtype=out_dtype)
    return out.reshape(n, ho, wo, cout)


def mlp_head(x, layers, *, out_features, tm_max=256):
    """Fused MLP head.  x: [M, K] float; layers: list of (w_p, b_p) padded."""
    M, K = x.shape
    K0p = layers[0][0].shape[0]
    Np_last = layers[-1][0].shape[1]
    n_layers = len(layers)

    tm = min(tm_max, _round_up(M, 8))
    Mp = _round_up(M, tm)
    x_p = x.astype(jnp.bfloat16)
    if (Mp, K0p) != (M, K):
        x_p = jnp.pad(x_p, ((0, Mp - M), (0, K0p - K)))

    in_specs = [pl.BlockSpec((tm, K0p), lambda i: (i, 0))]
    operands = [x_p]
    flops = 0
    bytes_acc = Mp * K0p * 2 + Mp * Np_last * 4
    for w_p, b_p in layers:
        kp, npad = w_p.shape
        in_specs.append(pl.BlockSpec((kp, npad), lambda i: (0, 0)))
        in_specs.append(pl.BlockSpec((1, npad), lambda i: (0, 0)))
        operands.extend([w_p, b_p])
        flops += 2 * Mp * kp * npad
        bytes_acc += kp * npad * 2 + npad * 4

    out = pl.pallas_call(
        functools.partial(_mlp_head_kernel, n_layers=n_layers),
        grid=(Mp // tm,),
        in_specs=in_specs,
        out_specs=pl.BlockSpec((tm, Np_last), lambda i: (i, 0)),
        out_shape=jax.ShapeDtypeStruct((Mp, Np_last), jnp.float32),
        compiler_params=_mm_compiler_params(),
        cost_estimate=pl.CostEstimate(flops=int(flops), transcendentals=0,
                                      bytes_accessed=int(bytes_acc)),
    )(*operands)
    return out[:M, :out_features]


# ---------------------------------------------------------------------------
# Parameter init (deterministic, PyTorch-default-like uniform), pre-padded
# ---------------------------------------------------------------------------
def _uniform_init(key, shape, fan_in):
    bound = 1.0 / float(fan_in) ** 0.5
    return jax.random.uniform(key, shape, jnp.float32, -bound, bound)


def _pad_weight_bf16(w, kp, npad):
    k, n = w.shape
    return jnp.pad(w, ((0, kp - k), (0, npad - n))).astype(jnp.bfloat16)


def _pad_bias_f32(b, npad):
    return jnp.pad(b, (0, npad - b.shape[0])).reshape(1, npad).astype(jnp.float32)


class EncoderModelPallas:
    """JAX/Pallas re-implementation of EncoderModel (Conv2dModel + MlpModel,
    use_maxpool=False, ReLU nonlinearities, linear output head)."""

    def __init__(self, image_shape, latent_size, channels, kernel_sizes,
                 strides, paddings=None, hidden_sizes=None, key=None):
        c, h, w = image_shape
        if paddings is None:
            paddings = [0] * len(channels)
        if hidden_sizes is None:
            hidden_sizes = []
        elif isinstance(hidden_sizes, int):
            hidden_sizes = [hidden_sizes]
        assert len(channels) == len(kernel_sizes) == len(strides) == len(paddings)
        key = jax.random.PRNGKey(0) if key is None else key

        in_channels = [c] + list(channels[:-1])
        self.conv_params = []
        for ic, oc, k, s, p in zip(in_channels, channels, kernel_sizes,
                                   strides, paddings):
            key, kw_, kb_ = jax.random.split(key, 3)
            fan_in = ic * k * k
            wgt = _uniform_init(kw_, (k, k, ic, oc), fan_in).reshape(k * k * ic, oc)
            bias = _uniform_init(kb_, (oc,), fan_in)
            kp = _round_up(k * k * ic, SUBLANE_BF16)
            npad = _round_up(oc, LANE)
            self.conv_params.append(dict(
                w=_pad_weight_bf16(wgt, kp, npad),
                b=_pad_bias_f32(bias, npad),
                ksize=k, stride=s, pad=p, cout=oc))
            h = (h + 2 * p - k) // s + 1    # conv2d_output_shape, dilation=1
            w = (w + 2 * p - k) // s + 1

        self.conv_out_hw = (h, w)
        self._c_last = channels[-1]
        self._output_size = h * w * channels[-1]
        self.latent_size = latent_size

        sizes = [self._output_size] + list(hidden_sizes) + [latent_size]
        self.head_params = []
        for li, (n_in, n_out) in enumerate(zip(sizes[:-1], sizes[1:])):
            key, kw_, kb_ = jax.random.split(key, 3)
            if li == 0:
                # Initialize in PyTorch (C,H,W)-flatten row order, then permute
                # the rows to NHWC-flatten order so the head consumes the conv
                # features directly (no runtime NCHW transpose on this path).
                wgt = _uniform_init(kw_, (self._c_last, h, w, n_out), n_in)
                wgt = jnp.transpose(wgt, (1, 2, 0, 3)).reshape(n_in, n_out)
                kp = _round_up(n_in, SUBLANE_BF16)
            else:
                wgt = _uniform_init(kw_, (n_in, n_out), n_in)
                kp = _round_up(n_in, LANE)   # equals previous layer's padded width
            bias = _uniform_init(kb_, (n_out,), n_in)
            npad = _round_up(n_out, LANE)
            self.head_params.append((_pad_weight_bf16(wgt, kp, npad),
                                     _pad_bias_f32(bias, npad)))

    @property
    def output_size(self):
        return self._output_size

    def __call__(self, observation):
        # infer_leading_dims(observation, 3): flatten leading (T/B) dims.
        lead_shape = observation.shape[:-3]
        img_shape = observation.shape[-3:]
        obs = observation.reshape((-1,) + img_shape)      # [TB, C, H, W]

        # uint8 -> bf16 with the 1/255 scale fused into the cast; float inputs
        # also go to bf16 (the MXU path is bf16-input / f32-accumulate anyway).
        if obs.dtype == jnp.uint8:
            x = obs.astype(jnp.bfloat16) * (1.0 / 255.0)
        else:
            x = obs.astype(jnp.bfloat16)
        x = jnp.transpose(x, (0, 2, 3, 1))                # NCHW -> NHWC

        n_conv = len(self.conv_params)
        for li, prm in enumerate(self.conv_params):
            last = li == n_conv - 1
            x = conv2d_relu(
                x, prm["w"], prm["b"], ksize=prm["ksize"], stride=prm["stride"],
                pad=prm["pad"], cout=prm["cout"],
                out_dtype=jnp.float32 if last else jnp.bfloat16)

        tb = x.shape[0]
        # Latent path: consume the NHWC flatten directly (head W0 rows were
        # permuted at init), fused single-kernel MLP head.
        flat = x.reshape(tb, self._output_size)
        latent = mlp_head(flat, self.head_params, out_features=self.latent_size)

        # Returned conv map must be NCHW to mirror the PyTorch module.
        conv_nchw = jnp.transpose(x, (0, 3, 1, 2))

        latent = latent.reshape(lead_shape + (self.latent_size,))
        conv_out = conv_nchw.reshape(lead_shape + conv_nchw.shape[1:])
        return latent, conv_out


if __name__ == "__main__":
    # Small, module-consistent config.
    image_shape = (4, 16, 16)          # (C, H, W)
    latent_size = 16
    channels = [8, 16]
    kernel_sizes = [3, 3]
    strides = [2, 2]
    paddings = [1, 1]
    hidden_sizes = [32]
    batch = 2

    root = jax.random.PRNGKey(0)
    k_obs, k_params = jax.random.split(root)

    model = EncoderModelPallas(
        image_shape=image_shape, latent_size=latent_size, channels=channels,
        kernel_sizes=kernel_sizes, strides=strides, paddings=paddings,
        hidden_sizes=hidden_sizes, key=k_params)

    observation = jax.random.uniform(
        k_obs, (batch,) + image_shape, dtype=jnp.float32)

    fwd = jax.jit(model.__call__)
    c, conv = fwd(observation)
    jax.block_until_ready((c, conv))

    assert c.shape == (batch, latent_size), c.shape
    assert conv.shape == (batch, channels[-1], *model.conv_out_hw), conv.shape
    print("KERNEL_OK")
</pallas_src>

<mosaic_0001>
module attributes {stable_mosaic.version = 11 : i64} {
  func.func @_mm_bias_act_kernel(%arg0: i32, %arg1: memref<128x48xbf16, #tpu.memory_space<vmem>>, %arg2: memref<48x128xbf16, #tpu.memory_space<vmem>>, %arg3: memref<1x128xf32, #tpu.memory_space<vmem>>, %arg4: memref<128x128xbf16, #tpu.memory_space<vmem>>) attributes {dimension_semantics = [#tpu.dimension_semantics<parallel>], iteration_bounds = array<i64: 1>, scalar_prefetch = 0 : i64, scratch_operands = 0 : i64, tpu.core_type = #tpu.core_type<tc>, window_params = [{transform_indices = @transform_0, window_bounds = array<i64: 128, 48>}, {pipeline_mode = #tpu.pipeline_mode<synchronous>, transform_indices = @transform_1, window_bounds = array<i64: 48, 128>}, {pipeline_mode = #tpu.pipeline_mode<synchronous>, transform_indices = @transform_2, window_bounds = array<i64: 1, 128>}, {transform_indices = @transform_3, window_bounds = array<i64: 128, 128>}]} {
    %c0 = arith.constant 0 : index
    %c0_0 = arith.constant 0 : index
    %0 = vector.load %arg1[%c0, %c0_0] : memref<128x48xbf16, #tpu.memory_space<vmem>>, vector<128x48xbf16>
    %c0_1 = arith.constant 0 : index
    %c0_2 = arith.constant 0 : index
    %1 = vector.load %arg2[%c0_1, %c0_2] : memref<48x128xbf16, #tpu.memory_space<vmem>>, vector<48x128xbf16>
    %cst = arith.constant dense<0.000000e+00> : vector<128x128xf32>
    %2 = tpu.matmul %0, %1, %cst {dimension_numbers = #tpu.dot_dimension_numbers<[1], [0], [0], [1], [0, 0, 1, 1], [], []>} : vector<128x48xbf16>, vector<48x128xbf16>, vector<128x128xf32> -> vector<128x128xf32>
    %c0_3 = arith.constant 0 : index
    %c0_4 = arith.constant 0 : index
    %3 = vector.load %arg3[%c0_3, %c0_4] : memref<1x128xf32, #tpu.memory_space<vmem>>, vector<1x128xf32>
    %4 = vector.broadcast %3 : vector<1x128xf32> to vector<128x128xf32>
    %5 = arith.addf %2, %4 : vector<128x128xf32>
    %cst_5 = arith.constant 0.000000e+00 : f32
    %6 = vector.broadcast %cst_5 : f32 to vector<128x128xf32>
    %7 = arith.maximumf %5, %6 : vector<128x128xf32>
    %8 = arith.truncf %7 : vector<128x128xf32> to vector<128x128xbf16>
    %c0_6 = arith.constant 0 : index
    %c0_7 = arith.constant 0 : index
    %9 = vector.load %arg4[%c0_6, %c0_7] : memref<128x128xbf16, #tpu.memory_space<vmem>>, vector<128x128xbf16>
    tpu.vector_store %arg4[%c0_6, %c0_7], %8 {strides = array<i32>} : memref<128x128xbf16, #tpu.memory_space<vmem>>, vector<128x128xbf16>,
    return
  }
  func.func @transform_0(%arg0: i32) -> (i32, i32) {
    %c0_i32 = arith.constant 0 : i32
    %c0_i32_0 = arith.constant 0 : i32
    return %arg0, %c0_i32 : i32, i32
  }
  func.func @transform_1(%arg0: i32) -> (i32, i32) {
    %c0_i32 = arith.constant 0 : i32
    %c0_i32_0 = arith.constant 0 : i32
    %c0_i32_1 = arith.constant 0 : i32
    return %c0_i32, %c0_i32_0 : i32, i32
  }
  func.func @transform_2(%arg0: i32) -> (i32, i32) {
    %c0_i32 = arith.constant 0 : i32
    %c0_i32_0 = arith.constant 0 : i32
    %c0_i32_1 = arith.constant 0 : i32
    return %c0_i32, %c0_i32_0 : i32, i32
  }
  func.func @transform_3(%arg0: i32) -> (i32, i32) {
    %c0_i32 = arith.constant 0 : i32
    %c0_i32_0 = arith.constant 0 : i32
    return %arg0, %c0_i32 : i32, i32
  }
}

module attributes {stable_mosaic.version = 11 : i64} {
  func.func @_mm_bias_act_kernel(%arg0: i32, %arg1: memref<32x80xbf16, #tpu.memory_space<vmem>>, %arg2: memref<80x128xbf16, #tpu.memory_space<vmem>>, %arg3: memref<1x128xf32, #tpu.memory_space<vmem>>, %arg4: memref<32x128xf32, #tpu.memory_space<vmem>>) attributes {dimension_semantics = [#tpu.dimension_semantics<parallel>], iteration_bounds = array<i64: 1>, scalar_prefetch = 0 : i64, scratch_operands = 0 : i64, tpu.core_type = #tpu.core_type<tc>, window_params = [{transform_indices = @transform_0, window_bounds = array<i64: 32, 80>}, {pipeline_mode = #tpu.pipeline_mode<synchronous>, transform_indices = @transform_1, window_bounds = array<i64: 80, 128>}, {pipeline_mode = #tpu.pipeline_mode<synchronous>, transform_indices = @transform_2, window_bounds = array<i64: 1, 128>}, {transform_indices = @transform_3, window_bounds = array<i64: 32, 128>}]} {
    %c0 = arith.constant 0 : index
    %c0_0 = arith.constant 0 : index
    %0 = vector.load %arg1[%c0, %c0_0] : memref<32x80xbf16, #tpu.memory_space<vmem>>, vector<32x80xbf16>
    %c0_1 = arith.constant 0 : index
    %c0_2 = arith.constant 0 : index
    %1 = vector.load %arg2[%c0_1, %c0_2] : memref<80x128xbf16, #tpu.memory_space<vmem>>, vector<80x128xbf16>
    %cst = arith.constant dense<0.000000e+00> : vector<32x128xf32>
    %2 = tpu.matmul %0, %1, %cst {dimension_numbers = #tpu.dot_dimension_numbers<[1], [0], [0], [1], [0, 0, 1, 1], [], []>} : vector<32x80xbf16>, vector<80x128xbf16>, vector<32x128xf32> -> vector<32x128xf32>
    %c0_3 = arith.constant 0 : index
    %c0_4 = arith.constant 0 : index
    %3 = vector.load %arg3[%c0_3, %c0_4] : memref<1x128xf32, #tpu.memory_space<vmem>>, vector<1x128xf32>
    %4 = vector.broadcast %3 : vector<1x128xf32> to vector<32x128xf32>
    %5 = arith.addf %2, %4 : vector<32x128xf32>
    %cst_5 = arith.constant 0.000000e+00 : f32
    %6 = vector.broadcast %cst_5 : f32 to vector<32x128xf32>
    %7 = arith.maximumf %5, %6 : vector<32x128xf32>
    %c0_6 = arith.constant 0 : index
    %c0_7 = arith.constant 0 : index
    %8 = vector.load %arg4[%c0_6, %c0_7] : memref<32x128xf32, #tpu.memory_space<vmem>>, vector<32x128xf32>
    tpu.vector_store %arg4[%c0_6, %c0_7], %7 {strides = array<i32>} : memref<32x128xf32, #tpu.memory_space<vmem>>, vector<32x128xf32>,
    return
  }
  func.func @transform_0(%arg0: i32) -> (i32, i32) {
    %c0_i32 = arith.constant 0 : i32
    %c0_i32_0 = arith.constant 0 : i32
    return %arg0, %c0_i32 : i32, i32
  }
  func.func @transform_1(%arg0: i32) -> (i32, i32) {
    %c0_i32 = arith.constant 0 : i32
    %c0_i32_0 = arith.constant 0 : i32
    %c0_i32_1 = arith.constant 0 : i32
    return %c0_i32, %c0_i32_0 : i32, i32
  }
  func.func @transform_2(%arg0: i32) -> (i32, i32) {
    %c0_i32 = arith.constant 0 : i32
    %c0_i32_0 = arith.constant 0 : i32
    %c0_i32_1 = arith.constant 0 : i32
    return %c0_i32, %c0_i32_0 : i32, i32
  }
  func.func @transform_3(%arg0: i32) -> (i32, i32) {
    %c0_i32 = arith.constant 0 : i32
    %c0_i32_0 = arith.constant 0 : i32
    return %arg0, %c0_i32 : i32, i32
  }
}

module attributes {stable_mosaic.version = 11 : i64} {
  func.func @_mlp_head_kernel(%arg0: i32, %arg1: memref<8x256xbf16, #tpu.memory_space<vmem>>, %arg2: memref<256x128xbf16, #tpu.memory_space<vmem>>, %arg3: memref<1x128xf32, #tpu.memory_space<vmem>>, %arg4: memref<128x128xbf16, #tpu.memory_space<vmem>>, %arg5: memref<1x128xf32, #tpu.memory_space<vmem>>, %arg6: memref<8x128xf32, #tpu.memory_space<vmem>>) attributes {dimension_semantics = [#tpu.dimension_semantics<parallel>], iteration_bounds = array<i64: 1>, scalar_prefetch = 0 : i64, scratch_operands = 0 : i64, tpu.core_type = #tpu.core_type<tc>, window_params = [{transform_indices = @transform_0, window_bounds = array<i64: 8, 256>}, {pipeline_mode = #tpu.pipeline_mode<synchronous>, transform_indices = @transform_1, window_bounds = array<i64: 256, 128>}, {pipeline_mode = #tpu.pipeline_mode<synchronous>, transform_indices = @transform_2, window_bounds = array<i64: 1, 128>}, {pipeline_mode = #tpu.pipeline_mode<synchronous>, transform_indices = @transform_3, window_bounds = array<i64: 128, 128>}, {pipeline_mode = #tpu.pipeline_mode<synchronous>, transform_indices = @transform_4, window_bounds = array<i64: 1, 128>}, {transform_indices = @transform_5, window_bounds = array<i64: 8, 128>}]} {
    %c0 = arith.constant 0 : index
    %c0_0 = arith.constant 0 : index
    %0 = vector.load %arg1[%c0, %c0_0] : memref<8x256xbf16, #tpu.memory_space<vmem>>, vector<8x256xbf16>
    %c0_1 = arith.constant 0 : index
    %c0_2 = arith.constant 0 : index
    %1 = vector.load %arg2[%c0_1, %c0_2] : memref<256x128xbf16, #tpu.memory_space<vmem>>, vector<256x128xbf16>
    %c0_3 = arith.constant 0 : index
    %c0_4 = arith.constant 0 : index
    %2 = vector.load %arg3[%c0_3, %c0_4] : memref<1x128xf32, #tpu.memory_space<vmem>>, vector<1x128xf32>
    %cst = arith.constant dense<0.000000e+00> : vector<8x128xf32>
    %3 = tpu.matmul %0, %1, %cst {dimension_numbers = #tpu.dot_dimension_numbers<[1], [0], [0], [1], [0, 0, 1, 1], [], []>} : vector<8x256xbf16>, vector<256x128xbf16>, vector<8x128xf32> -> vector<8x128xf32>
    %4 = vector.broadcast %2 : vector<1x128xf32> to vector<8x128xf32>
    %5 = arith.addf %3, %4 : vector<8x128xf32>
    %cst_5 = arith.constant 0.000000e+00 : f32
    %6 = vector.broadcast %cst_5 : f32 to vector<8x128xf32>
    %7 = arith.maximumf %5, %6 : vector<8x128xf32>
    %c0_6 = arith.constant 0 : index
    %c0_7 = arith.constant 0 : index
    %8 = vector.load %arg4[%c0_6, %c0_7] : memref<128x128xbf16, #tpu.memory_space<vmem>>, vector<128x128xbf16>
    %c0_8 = arith.constant 0 : index
    %c0_9 = arith.constant 0 : index
    %9 = vector.load %arg5[%c0_8, %c0_9] : memref<1x128xf32, #tpu.memory_space<vmem>>, vector<1x128xf32>
    %10 = arith.truncf %7 : vector<8x128xf32> to vector<8x128xbf16>
    %cst_10 = arith.constant dense<0.000000e+00> : vector<8x128xf32>
    %11 = tpu.matmul %10, %8, %cst_10 {dimension_numbers = #tpu.dot_dimension_numbers<[1], [0], [0], [1], [0, 0, 1, 1], [], []>} : vector<8x128xbf16>, vector<128x128xbf16>, vector<8x128xf32> -> vector<8x128xf32>
    %12 = vector.broadcast %9 : vector<1x128xf32> to vector<8x128xf32>
    %13 = arith.addf %11, %12 : vector<8x128xf32>
    %c0_11 = arith.constant 0 : index
    %c0_12 = arith.constant 0 : index
    %14 = vector.load %arg6[%c0_11, %c0_12] : memref<8x128xf32, #tpu.memory_space<vmem>>, vector<8x128xf32>
    tpu.vector_store %arg6[%c0_11, %c0_12], %13 {strides = array<i32>} : memref<8x128xf32, #tpu.memory_space<vmem>>, vector<8x128xf32>,
    return
  }
  func.func @transform_0(%arg0: i32) -> (i32, i32) {
    %c0_i32 = arith.constant 0 : i32
    %c0_i32_0 = arith.constant 0 : i32
    return %arg0, %c0_i32 : i32, i32
  }
  func.func @transform_1(%arg0: i32) -> (i32, i32) {
    %c0_i32 = arith.constant 0 : i32
    %c0_i32_0 = arith.constant 0 : i32
    %c0_i32_1 = arith.constant 0 : i32
    return %c0_i32, %c0_i32_0 : i32, i32
  }
  func.func @transform_2(%arg0: i32) -> (i32, i32) {
    %c0_i32 = arith.constant 0 : i32
    %c0_i32_0 = arith.constant 0 : i32
    %c0_i32_1 = arith.constant 0 : i32
    return %c0_i32, %c0_i32_0 : i32, i32
  }
  func.func @transform_3(%arg0: i32) -> (i32, i32) {
    %c0_i32 = arith.constant 0 : i32
    %c0_i32_0 = arith.constant 0 : i32
    %c0_i32_1 = arith.constant 0 : i32
    return %c0_i32, %c0_i32_0 : i32, i32
  }
  func.func @transform_4(%arg0: i32) -> (i32, i32) {
    %c0_i32 = arith.constant 0 : i32
    %c0_i32_0 = arith.constant 0 : i32
    %c0_i32_1 = arith.constant 0 : i32
    return %c0_i32, %c0_i32_0 : i32, i32
  }
  func.func @transform_5(%arg0: i32) -> (i32, i32) {
    %c0_i32 = arith.constant 0 : i32
    %c0_i32_0 = arith.constant 0 : i32
    return %arg0, %c0_i32 : i32, i32
  }
}

</mosaic_0001>

<llo_original>
// kernel: a_call__.3
$region0: #{a_call__.3}
  #allocation0 [shape = 'u32[]', space=smem, size = 0x4, offset = 0x4, fixed_abs, tag = 'smem constant byte address 0x4 - core index']
  #allocation1 [shape = 'u32[72,128]{1,0:T(1,128)}', space=vmem, size = 0x9000, scoped, tag = 'internal scratch']
  %s0 = inlined_call_operand.vmem [shape: bf16[128,48], index: 0, kind: input, shape index: {}]
  %s1 = inlined_call_operand.vmem [shape: bf16[48,128], index: 1, kind: input, shape index: {}]
  %s2 = inlined_call_operand.vmem [shape: f32[1,128], index: 2, kind: input, shape index: {}]
  %s3 = inlined_call_operand.vmem [shape: bf16[128,128], index: 3, kind: output, shape index: {}]
  %s4 = sld [smem:[#allocation0]]
  $region22: #{a_call__.3} parent=0
    _
  %s6 = ssub.s32 1, %s4
  %s7 = scalar_select 0, %s6, %s4
  // Predicated region
  $region2: #{a_call__.3} parent=0 // pred_check
    _
  $region3: #{a_call__.3} parent=0 // pred_check_branch
    %9 = sbr.rel (0) target = $region5
  $region4: #{a_call__.3} parent=0 // pred_region
    _
  $region5: #{a_call__.3} parent=0 // pred_fallthru
    _
  // Predicated region
  $region6: #{a_call__.3} parent=0 // pred_check
    _
  $region7: #{a_call__.3} parent=0 // pred_check_branch
    %11 = sbr.rel (0) target = $region9
  $region8: #{a_call__.3} parent=0 // pred_region
    _
  $region9: #{a_call__.3} parent=0 // pred_fallthru
    _
  // Predicated region
  $region10: #{a_call__.3} parent=0 // pred_check
    _
  $region11: #{a_call__.3} parent=0 // pred_check_branch
    %13 = sbr.rel (0) target = $region13
  $region12: #{a_call__.3} parent=0 // pred_region
    _
  $region13: #{a_call__.3} parent=0 // pred_fallthru
    _
  %v15 = vld [vmem:[%s0] sm:$0xf]
  %v16 = vld [vmem:[%s0 + $0x4] sm:$0xf]
  %v17 = vld [vmem:[%s0 + $0x8] sm:$0xf]
  %v18 = vld [vmem:[%s0 + $0xc] sm:$0xf]
  %v19 = vld [vmem:[%s0 + $0x10] sm:$0xf]
  %v20 = vld [vmem:[%s0 + $0x14] sm:$0xf]
  %v21 = vld [vmem:[%s0 + $0x18] sm:$0xf]
  %v22 = vld [vmem:[%s0 + $0x1c] sm:$0xf]
  %v23 = vld [vmem:[%s0 + $0x20] sm:$0xf]
  %v24 = vld [vmem:[%s0 + $0x24] sm:$0xf]
  %v25 = vld [vmem:[%s0 + $0x28] sm:$0xf]
  %v26 = vld [vmem:[%s0 + $0x2c] sm:$0xf]
  %v27 = vld [vmem:[%s0 + $0x30] sm:$0xf]
  %v28 = vld [vmem:[%s0 + $0x34] sm:$0xf]
  %v29 = vld [vmem:[%s0 + $0x38] sm:$0xf]
  %v30 = vld [vmem:[%s0 + $0x3c] sm:$0xf]
  %v31 = vld [vmem:[%s1] sm:$0xf]
  %v32 = vld [vmem:[%s1 + $0x4] sm:$0xf]
  %v33 = vld [vmem:[%s1 + $0x8] sm:$0xf]
  %v34 = vld [vmem:[%s1 + $0xc] sm:$0xf]
  %v35 = vld [vmem:[%s1 + $0x10] sm:$0xf]
  %v36 = vld [vmem:[%s1 + $0x14] sm:$0xf]
  %v37 = vld [vmem:[%s2] sm:$0x1]
  %v39 = vperm.slane %v37, 0
  %v57 = vunpack.c.l.b16 %v15
  %v58 = vunpack.c.l.b16 %v16
  %v59 = vunpack.c.l.b16 %v17
  %v60 = vunpack.c.l.b16 %v18
  %v61 = vunpack.c.l.b16 %v19
  %v62 = vunpack.c.l.b16 %v20
  %v63 = vunpack.c.l.b16 %v21
  %v64 = vunpack.c.l.b16 %v22
  %v65 = vunpack.c.l.b16 %v23
  %v66 = vunpack.c.l.b16 %v24
  %v67 = vunpack.c.l.b16 %v25
  %v68 = vunpack.c.l.b16 %v26
  %v69 = vunpack.c.l.b16 %v27
  %v70 = vunpack.c.l.b16 %v28
  %v71 = vunpack.c.l.b16 %v29
  %v72 = vunpack.c.l.b16 %v30
  %v73 = vpack.c.b16 %v58, %v57
  %v74 = vpack.c.b16 %v60, %v59
  %v75 = vpack.c.b16 %v62, %v61
  %v76 = vpack.c.b16 %v64, %v63
  %v77 = vpack.c.b16 %v66, %v65
  %v78 = vpack.c.b16 %v68, %v67
  %v79 = vpack.c.b16 %v70, %v69
  %v80 = vpack.c.b16 %v72, %v71
  %v87 = vunpack.c.l.b16 %v31
  %v88 = vunpack.c.l.b16 %v32
  %v89 = vunpack.c.l.b16 %v33
  %v90 = vunpack.c.l.b16 %v34
  %v91 = vunpack.c.l.b16 %v35
  %v92 = vunpack.c.l.b16 %v36
  %v93 = vpack.c.b16 %v88, %v87
  %v94 = vpack.c.b16 %v90, %v89
  %v95 = vpack.c.b16 %v92, %v91
  %vm99 = vcmask 392192
  %v101 = vsel %vm99, %v73, 0
  %v104 = vsel %vm99, %v74, 0
  %v107 = vsel %vm99, %v75, 0
  %v110 = vsel %vm99, %v76, 0
  %v113 = vsel %vm99, %v77, 0
  %v116 = vsel %vm99, %v78, 0
  %v119 = vsel %vm99, %v79, 0
  %v122 = vsel %vm99, %v80, 0
  %124 = vmatpush.bf16.msra.mxu0 0
  %125 = vmatpush.bf16.msra.mxu0 0
  %126 = vmatpush.bf16.msra.mxu0 0
  %127 = vmatpush.bf16.msra.mxu0 0
  %128 = vmatpush.bf16.msra.mxu0 0
  %129 = vmatpush.bf16.msra.mxu0 %v95
  %130 = vmatpush.bf16.msra.mxu0 %v94
  %131 = vmatpush.bf16.msra.mxu0 %v93
  %132 = vmatmul.bf16.gmra.mxu0 %v101
  %v133 = vpop.f32.mrf.mxu0
  %v134 = vadd.f32 %v39, %v133
  %v135 = vpop.f32.mrf.mxu0
  %v136 = vadd.f32 %v39, %v135
  %137 = vmatmul.bf16.gmra.mxu0 %v104
  %v138 = vpop.f32.mrf.mxu0
  %v139 = vadd.f32 %v39, %v138
  %v140 = vpop.f32.mrf.mxu0
  %v141 = vadd.f32 %v39, %v140
  %142 = vmatmul.bf16.gmra.mxu0 %v107
  %v143 = vpop.f32.mrf.mxu0
  %v144 = vadd.f32 %v39, %v143
  %v145 = vpop.f32.mrf.mxu0
  %v146 = vadd.f32 %v39, %v145
  %147 = vmatmul.bf16.gmra.mxu0 %v110
  %v148 = vpop.f32.mrf.mxu0
  %v149 = vadd.f32 %v39, %v148
  %v150 = vpop.f32.mrf.mxu0
  %v151 = vadd.f32 %v39, %v150
  %152 = vmatmul.bf16.gmra.mxu0 %v113
  %v153 = vpop.f32.mrf.mxu0
  %v154 = vadd.f32 %v39, %v153
  %v155 = vpop.f32.mrf.mxu0
  %v156 = vadd.f32 %v39, %v155
  %157 = vmatmul.bf16.gmra.mxu0 %v116
  %v158 = vpop.f32.mrf.mxu0
  %v159 = vadd.f32 %v39, %v158
  %v160 = vpop.f32.mrf.mxu0
  %v161 = vadd.f32 %v39, %v160
  %162 = vmatmul.bf16.gmra.mxu0 %v119
  %v163 = vpop.f32.mrf.mxu0
  %v164 = vadd.f32 %v39, %v163
  %v165 = vpop.f32.mrf.mxu0
  %v166 = vadd.f32 %v39, %v165
  %167 = vmatmul.bf16.gmra.mxu0 %v122
  %v168 = vpop.f32.mrf.mxu0
  %v169 = vadd.f32 %v39, %v168
  %v170 = vpop.f32.mrf.mxu0
  %v171 = vadd.f32 %v39, %v170
  %172 = vdwg.mxu0
  %v173 = vmax.f32 %v134, 0.0
  %v174 = vmax.f32 %v136, 0.0
  %v175 = vmax.f32 %v139, 0.0
  %v176 = vmax.f32 %v141, 0.0
  %v177 = vmax.f32 %v144, 0.0
  %v178 = vmax.f32 %v146, 0.0
  %v179 = vmax.f32 %v149, 0.0
  %v180 = vmax.f32 %v151, 0.0
  %v181 = vmax.f32 %v154, 0.0
  %v182 = vmax.f32 %v156, 0.0
  %v183 = vmax.f32 %v159, 0.0
  %v184 = vmax.f32 %v161, 0.0
  %v185 = vmax.f32 %v164, 0.0
  %v186 = vmax.f32 %v166, 0.0
  %v187 = vmax.f32 %v169, 0.0
  %v188 = vmax.f32 %v171, 0.0
  %v189 = vpack.c.bf16 %v173, %v173
  %v190 = vpack.c.bf16 %v174, %v174
  %v191 = vpack.c.bf16 %v175, %v175
  %v192 = vpack.c.bf16 %v176, %v176
  %v193 = vpack.c.bf16 %v177, %v177
  %v194 = vpack.c.bf16 %v178, %v178
  %v195 = vpack.c.bf16 %v179, %v179
  %v196 = vpack.c.bf16 %v180, %v180
  %v197 = vpack.c.bf16 %v181, %v181
  %v198 = vpack.c.bf16 %v182, %v182
  %v199 = vpack.c.bf16 %v183, %v183
  %v200 = vpack.c.bf16 %v184, %v184
  %v201 = vpack.c.bf16 %v185, %v185
  %v202 = vpack.c.bf16 %v186, %v186
  %v203 = vpack.c.bf16 %v187, %v187
  %v204 = vpack.c.bf16 %v188, %v188
  %205 = vst [vmem:[%s3] sm:$0xf] %v189
  %206 = vst [vmem:[%s3 + $0x4] sm:$0xf] %v190
  %207 = vst [vmem:[%s3 + $0x8] sm:$0xf] %v191
  %208 = vst [vmem:[%s3 + $0xc] sm:$0xf] %v192
  %209 = vst [vmem:[%s3 + $0x10] sm:$0xf] %v193
  %210 = vst [vmem:[%s3 + $0x14] sm:$0xf] %v194
  %211 = vst [vmem:[%s3 + $0x18] sm:$0xf] %v195
  %212 = vst [vmem:[%s3 + $0x1c] sm:$0xf] %v196
  %213 = vst [vmem:[%s3 + $0x20] sm:$0xf] %v197
  %214 = vst [vmem:[%s3 + $0x24] sm:$0xf] %v198
  %215 = vst [vmem:[%s3 + $0x28] sm:$0xf] %v199
  %216 = vst [vmem:[%s3 + $0x2c] sm:$0xf] %v200
  %217 = vst [vmem:[%s3 + $0x30] sm:$0xf] %v201
  %218 = vst [vmem:[%s3 + $0x34] sm:$0xf] %v202
  %219 = vst [vmem:[%s3 + $0x38] sm:$0xf] %v203
  %220 = vst [vmem:[%s3 + $0x3c] sm:$0xf] %v204
  // Predicated region
  $region14: #{a_call__.3} parent=0 // pred_check
    _
  $region15: #{a_call__.3} parent=0 // pred_check_branch
    %222 = sbr.rel (0) target = $region17
  $region16: #{a_call__.3} parent=0 // pred_region
    _
  $region17: #{a_call__.3} parent=0 // pred_fallthru
    _
  // Predicated region
  $region18: #{a_call__.3} parent=0 // pred_check
    _
  $region19: #{a_call__.3} parent=0 // pred_check_branch
    %224 = sbr.rel (0) target = $region21
  $region20: #{a_call__.3} parent=0 // pred_region
    _
  $region21: #{a_call__.3} parent=0 // pred_fallthru
    _

// kernel: a_call__.4
$region0: #{a_call__.4}
  #allocation0 [shape = 'u32[]', space=smem, size = 0x4, offset = 0x4, fixed_abs, tag = 'smem constant byte address 0x4 - core index']
  #allocation1 [shape = 'u32[72,128]{1,0:T(1,128)}', space=vmem, size = 0x9000, scoped, tag = 'internal scratch']
  %s0 = inlined_call_operand.vmem [shape: bf16[32,80], index: 0, kind: input, shape index: {}]
  %s1 = inlined_call_operand.vmem [shape: bf16[80,128], index: 1, kind: input, shape index: {}]
  %s2 = inlined_call_operand.vmem [shape: f32[1,128], index: 2, kind: input, shape index: {}]
  %s3 = inlined_call_operand.vmem [shape: f32[32,128], index: 3, kind: output, shape index: {}]
  %s4 = sld [smem:[#allocation0]]
  $region22: #{a_call__.4} parent=0
    _
  %s6 = ssub.s32 1, %s4
  %s7 = scalar_select 0, %s6, %s4
  // Predicated region
  $region2: #{a_call__.4} parent=0 // pred_check
    _
  $region3: #{a_call__.4} parent=0 // pred_check_branch
    %9 = sbr.rel (0) target = $region5
  $region4: #{a_call__.4} parent=0 // pred_region
    _
  $region5: #{a_call__.4} parent=0 // pred_fallthru
    _
  // Predicated region
  $region6: #{a_call__.4} parent=0 // pred_check
    _
  $region7: #{a_call__.4} parent=0 // pred_check_branch
    %11 = sbr.rel (0) target = $region9
  $region8: #{a_call__.4} parent=0 // pred_region
    _
  $region9: #{a_call__.4} parent=0 // pred_fallthru
    _
  // Predicated region
  $region10: #{a_call__.4} parent=0 // pred_check
    _
  $region11: #{a_call__.4} parent=0 // pred_check_branch
    %13 = sbr.rel (0) target = $region13
  $region12: #{a_call__.4} parent=0 // pred_region
    _
  $region13: #{a_call__.4} parent=0 // pred_fallthru
    _
  %v15 = vld [vmem:[%s0] sm:$0xf]
  %v16 = vld [vmem:[%s0 + $0x4] sm:$0xf]
  %v17 = vld [vmem:[%s0 + $0x8] sm:$0xf]
  %v18 = vld [vmem:[%s0 + $0xc] sm:$0xf]
  %v19 = vld [vmem:[%s1] sm:$0xf]
  %v20 = vld [vmem:[%s1 + $0x4] sm:$0xf]
  %v21 = vld [vmem:[%s1 + $0x8] sm:$0xf]
  %v22 = vld [vmem:[%s1 + $0xc] sm:$0xf]
  %v23 = vld [vmem:[%s1 + $0x10] sm:$0xf]
  %v24 = vld [vmem:[%s1 + $0x14] sm:$0xf]
  %v25 = vld [vmem:[%s1 + $0x18] sm:$0xf]
  %v26 = vld [vmem:[%s1 + $0x1c] sm:$0xf]
  %v27 = vld [vmem:[%s1 + $0x20] sm:$0xf]
  %v28 = vld [vmem:[%s1 + $0x24] sm:$0xf]
  %v29 = vld [vmem:[%s2] sm:$0x1]
  %v31 = vperm.slane %v29, 0
  %v37 = vunpack.c.l.b16 %v15
  %v38 = vunpack.c.l.b16 %v16
  %v39 = vunpack.c.l.b16 %v17
  %v40 = vunpack.c.l.b16 %v18
  %v41 = vpack.c.b16 %v38, %v37
  %v42 = vpack.c.b16 %v40, %v39
  %v53 = vunpack.c.l.b16 %v19
  %v54 = vunpack.c.l.b16 %v20
  %v55 = vunpack.c.l.b16 %v21
  %v56 = vunpack.c.l.b16 %v22
  %v57 = vunpack.c.l.b16 %v23
  %v58 = vunpack.c.l.b16 %v24
  %v59 = vunpack.c.l.b16 %v25
  %v60 = vunpack.c.l.b16 %v26
  %v61 = vunpack.c.l.b16 %v27
  %v62 = vunpack.c.l.b16 %v28
  %v63 = vpack.c.b16 %v54, %v53
  %v64 = vpack.c.b16 %v56, %v55
  %v65 = vpack.c.b16 %v58, %v57
  %v66 = vpack.c.b16 %v60, %v59
  %v67 = vpack.c.b16 %v62, %v61
  %vm73 = vcmask 654336
  %v75 = vsel %vm73, %v41, 0
  %v78 = vsel %vm73, %v42, 0
  %80 = vmatpush.bf16.msra.mxu0 0
  %81 = vmatpush.bf16.msra.mxu0 0
  %82 = vmatpush.bf16.msra.mxu0 0
  %83 = vmatpush.bf16.msra.mxu0 %v67
  %84 = vmatpush.bf16.msra.mxu0 %v66
  %85 = vmatpush.bf16.msra.mxu0 %v65
  %86 = vmatpush.bf16.msra.mxu0 %v64
  %87 = vmatpush.bf16.msra.mxu0 %v63
  %88 = vmatmul.bf16.gmra.mxu0 %v75
  %v89 = vpop.f32.mrf.mxu0
  %v90 = vadd.f32 %v31, %v89
  %v91 = vpop.f32.mrf.mxu0
  %v92 = vadd.f32 %v31, %v91
  %93 = vmatmul.bf16.gmra.mxu0 %v78
  %v94 = vpop.f32.mrf.mxu0
  %v95 = vadd.f32 %v31, %v94
  %v96 = vpop.f32.mrf.mxu0
  %v97 = vadd.f32 %v31, %v96
  %98 = vdwg.mxu0
  %v99 = vmax.f32 %v90, 0.0
  %v100 = vmax.f32 %v92, 0.0
  %v101 = vmax.f32 %v95, 0.0
  %v102 = vmax.f32 %v97, 0.0
  %103 = vst [vmem:[%s3] sm:$0xff] %v99
  %104 = vst [vmem:[%s3 + $0x8] sm:$0xff] %v100
  %105 = vst [vmem:[%s3 + $0x10] sm:$0xff] %v101
  %106 = vst [vmem:[%s3 + $0x18] sm:$0xff] %v102
  // Predicated region
  $region14: #{a_call__.4} parent=0 // pred_check
    _
  $region15: #{a_call__.4} parent=0 // pred_check_branch
    %108 = sbr.rel (0) target = $region17
  $region16: #{a_call__.4} parent=0 // pred_region
    _
  $region17: #{a_call__.4} parent=0 // pred_fallthru
    _
  // Predicated region
  $region18: #{a_call__.4} parent=0 // pred_check
    _
  $region19: #{a_call__.4} parent=0 // pred_check_branch
    %110 = sbr.rel (0) target = $region21
  $region20: #{a_call__.4} parent=0 // pred_region
    _
  $region21: #{a_call__.4} parent=0 // pred_fallthru
    _

// kernel: a_call__.5
$region0: #{a_call__.5}
  #allocation0 [shape = 'u32[]', space=smem, size = 0x4, offset = 0x4, fixed_abs, tag = 'smem constant byte address 0x4 - core index']
  #allocation1 [shape = 'u32[72,128]{1,0:T(1,128)}', space=vmem, size = 0x9000, scoped, tag = 'internal scratch']
  %s0 = inlined_call_operand.vmem [shape: bf16[8,256], index: 0, kind: input, shape index: {}]
  %s1 = inlined_call_operand.vmem [shape: bf16[256,128], index: 1, kind: input, shape index: {}]
  %s2 = inlined_call_operand.vmem [shape: f32[1,128], index: 2, kind: input, shape index: {}]
  %s3 = inlined_call_operand.vmem [shape: bf16[128,128], index: 3, kind: input, shape index: {}]
  %s4 = inlined_call_operand.vmem [shape: f32[1,128], index: 4, kind: input, shape index: {}]
  %s5 = inlined_call_operand.vmem [shape: f32[8,128], index: 5, kind: output, shape index: {}]
  %s6 = sld [smem:[#allocation0]]
  $region30: #{a_call__.5} parent=0
    _
  %s8 = ssub.s32 1, %s6
  %s9 = scalar_select 0, %s8, %s6
  // Predicated region
  $region2: #{a_call__.5} parent=0 // pred_check
    _
  $region3: #{a_call__.5} parent=0 // pred_check_branch
    %11 = sbr.rel (0) target = $region5
  $region4: #{a_call__.5} parent=0 // pred_region
    _
  $region5: #{a_call__.5} parent=0 // pred_fallthru
    _
  // Predicated region
  $region6: #{a_call__.5} parent=0 // pred_check
    _
  $region7: #{a_call__.5} parent=0 // pred_check_branch
    %13 = sbr.rel (0) target = $region9
  $region8: #{a_call__.5} parent=0 // pred_region
    _
  $region9: #{a_call__.5} parent=0 // pred_fallthru
    _
  // Predicated region
  $region10: #{a_call__.5} parent=0 // pred_check
    _
  $region11: #{a_call__.5} parent=0 // pred_check_branch
    %15 = sbr.rel (0) target = $region13
  $region12: #{a_call__.5} parent=0 // pred_region
    _
  $region13: #{a_call__.5} parent=0 // pred_fallthru
    _
  // Predicated region
  $region14: #{a_call__.5} parent=0 // pred_check
    _
  $region15: #{a_call__.5} parent=0 // pred_check_branch
    %17 = sbr.rel (0) target = $region17
  $region16: #{a_call__.5} parent=0 // pred_region
    _
  $region17: #{a_call__.5} parent=0 // pred_fallthru
    _
  // Predicated region
  $region18: #{a_call__.5} parent=0 // pred_check
    _
  $region19: #{a_call__.5} parent=0 // pred_check_branch
    %19 = sbr.rel (0) target = $region21
  $region20: #{a_call__.5} parent=0 // pred_region
    _
  $region21: #{a_call__.5} parent=0 // pred_fallthru
    _
  %v20 = vld [vmem:[%s0] sm:$0xff]
  %v21 = vld [vmem:[%s1] sm:$0xf]
  %v22 = vld [vmem:[%s1 + $0x4] sm:$0xf]
  %v23 = vld [vmem:[%s1 + $0x8] sm:$0xf]
  %v24 = vld [vmem:[%s1 + $0xc] sm:$0xf]
  %v25 = vld [vmem:[%s1 + $0x10] sm:$0xf]
  %v26 = vld [vmem:[%s1 + $0x14] sm:$0xf]
  %v27 = vld [vmem:[%s1 + $0x18] sm:$0xf]
  %v28 = vld [vmem:[%s1 + $0x1c] sm:$0xf]
  %v29 = vld [vmem:[%s1 + $0x20] sm:$0xf]
  %v30 = vld [vmem:[%s1 + $0x24] sm:$0xf]
  %v31 = vld [vmem:[%s1 + $0x28] sm:$0xf]
  %v32 = vld [vmem:[%s1 + $0x2c] sm:$0xf]
  %v33 = vld [vmem:[%s1 + $0x30] sm:$0xf]
  %v34 = vld [vmem:[%s1 + $0x34] sm:$0xf]
  %v35 = vld [vmem:[%s1 + $0x38] sm:$0xf]
  %v36 = vld [vmem:[%s1 + $0x3c] sm:$0xf]
  %v37 = vld [vmem:[%s1 + $0x40] sm:$0xf]
  %v38 = vld [vmem:[%s1 + $0x44] sm:$0xf]
  %v39 = vld [vmem:[%s1 + $0x48] sm:$0xf]
  %v40 = vld [vmem:[%s1 + $0x4c] sm:$0xf]
  %v41 = vld [vmem:[%s1 + $0x50] sm:$0xf]
  %v42 = vld [vmem:[%s1 + $0x54] sm:$0xf]
  %v43 = vld [vmem:[%s1 + $0x58] sm:$0xf]
  %v44 = vld [vmem:[%s1 + $0x5c] sm:$0xf]
  %v45 = vld [vmem:[%s1 + $0x60] sm:$0xf]
  %v46 = vld [vmem:[%s1 + $0x64] sm:$0xf]
  %v47 = vld [vmem:[%s1 + $0x68] sm:$0xf]
  %v48 = vld [vmem:[%s1 + $0x6c] sm:$0xf]
  %v49 = vld [vmem:[%s1 + $0x70] sm:$0xf]
  %v50 = vld [vmem:[%s1 + $0x74] sm:$0xf]
  %v51 = vld [vmem:[%s1 + $0x78] sm:$0xf]
  %v52 = vld [vmem:[%s1 + $0x7c] sm:$0xf]
  %v53 = vld [vmem:[%s2] sm:$0x1]
  %v55 = vperm.slane %v53, 0
  %v58 = vunpack.c.l.b16 %v20
  %v59 = vunpack.c.h.b16 %v20
  %v60 = vpack.c.b16 %v58, %v58
  %v61 = vpack.c.b16 %v59, %v59
  %v96 = vunpack.c.l.b16 %v21
  %v97 = vunpack.c.l.b16 %v22
  %v98 = vunpack.c.l.b16 %v23
  %v99 = vunpack.c.l.b16 %v24
  %v100 = vunpack.c.l.b16 %v25
  %v101 = vunpack.c.l.b16 %v26
  %v102 = vunpack.c.l.b16 %v27
  %v103 = vunpack.c.l.b16 %v28
  %v104 = vunpack.c.l.b16 %v29
  %v105 = vunpack.c.l.b16 %v30
  %v106 = vunpack.c.l.b16 %v31
  %v107 = vunpack.c.l.b16 %v32
  %v108 = vunpack.c.l.b16 %v33
  %v109 = vunpack.c.l.b16 %v34
  %v110 = vunpack.c.l.b16 %v35
  %v111 = vunpack.c.l.b16 %v36
  %v112 = vunpack.c.l.b16 %v37
  %v113 = vunpack.c.l.b16 %v38
  %v114 = vunpack.c.l.b16 %v39
  %v115 = vunpack.c.l.b16 %v40
  %v116 = vunpack.c.l.b16 %v41
  %v117 = vunpack.c.l.b16 %v42
  %v118 = vunpack.c.l.b16 %v43
  %v119 = vunpack.c.l.b16 %v44
  %v120 = vunpack.c.l.b16 %v45
  %v121 = vunpack.c.l.b16 %v46
  %v122 = vunpack.c.l.b16 %v47
  %v123 = vunpack.c.l.b16 %v48
  %v124 = vunpack.c.l.b16 %v49
  %v125 = vunpack.c.l.b16 %v50
  %v126 = vunpack.c.l.b16 %v51
  %v127 = vunpack.c.l.b16 %v52
  %v128 = vpack.c.b16 %v97, %v96
  %v129 = vpack.c.b16 %v99, %v98
  %v130 = vpack.c.b16 %v101, %v100
  %v131 = vpack.c.b16 %v103, %v102
  %v132 = vpack.c.b16 %v105, %v104
  %v133 = vpack.c.b16 %v107, %v106
  %v134 = vpack.c.b16 %v109, %v108
  %v135 = vpack.c.b16 %v111, %v110
  %v136 = vpack.c.b16 %v113, %v112
  %v137 = vpack.c.b16 %v115, %v114
  %v138 = vpack.c.b16 %v117, %v116
  %v139 = vpack.c.b16 %v119, %v118
  %v140 = vpack.c.b16 %v121, %v120
  %v141 = vpack.c.b16 %v123, %v122
  %v142 = vpack.c.b16 %v125, %v124
  %v143 = vpack.c.b16 %v127, %v126
  %160 = vmatpush.bf16.msra.mxu0 %v135
  %161 = vmatpush.bf16.msra.mxu0 %v134
  %162 = vmatpush.bf16.msra.mxu0 %v133
  %163 = vmatpush.bf16.msra.mxu0 %v132
  %164 = vmatpush.bf16.msra.mxu0 %v131
  %165 = vmatpush.bf16.msra.mxu0 %v130
  %166 = vmatpush.bf16.msra.mxu0 %v129
  %167 = vmatpush.bf16.msra.mxu0 %v128
  %168 = vmatmul.bf16.gmra.mxu0 %v60
  %v169 = vpop.f32.mrf.mxu0
  %v170 = vadd.f32 %v55, %v169
  %v171 = vpop.f32.mrf.mxu0
  %172 = vdwg.mxu0
  %173 = vmatpush.bf16.msra.mxu0 %v143
  %174 = vmatpush.bf16.msra.mxu0 %v142
  %175 = vmatpush.bf16.msra.mxu0 %v141
  %176 = vmatpush.bf16.msra.mxu0 %v140
  %177 = vmatpush.bf16.msra.mxu0 %v139
  %178 = vmatpush.bf16.msra.mxu0 %v138
  %179 = vmatpush.bf16.msra.mxu0 %v137
  %180 = vmatpush.bf16.msra.mxu0 %v136
  %181 = vmatmul.bf16.gmra.mxu0 %v61
  %v182 = vpop.f32.mrf.mxu0
  %v183 = vadd.f32 %v170, %v182
  %v184 = vpop.f32.mrf.mxu0
  %185 = vdwg.mxu0
  %v186 = vmax.f32 %v183, 0.0
  %v187 = vld [vmem:[%s3] sm:$0xf]
  %v188 = vld [vmem:[%s3 + $0x4] sm:$0xf]
  %v189 = vld [vmem:[%s3 + $0x8] sm:$0xf]
  %v190 = vld [vmem:[%s3 + $0xc] sm:$0xf]
  %v191 = vld [vmem:[%s3 + $0x10] sm:$0xf]
  %v192 = vld [vmem:[%s3 + $0x14] sm:$0xf]
  %v193 = vld [vmem:[%s3 + $0x18] sm:$0xf]
  %v194 = vld [vmem:[%s3 + $0x1c] sm:$0xf]
  %v195 = vld [vmem:[%s3 + $0x20] sm:$0xf]
  %v196 = vld [vmem:[%s3 + $0x24] sm:$0xf]
  %v197 = vld [vmem:[%s3 + $0x28] sm:$0xf]
  %v198 = vld [vmem:[%s3 + $0x2c] sm:$0xf]
  %v199 = vld [vmem:[%s3 + $0x30] sm:$0xf]
  %v200 = vld [vmem:[%s3 + $0x34] sm:$0xf]
  %v201 = vld [vmem:[%s3 + $0x38] sm:$0xf]
  %v202 = vld [vmem:[%s3 + $0x3c] sm:$0xf]
  %v203 = vld [vmem:[%s4] sm:$0x1]
  %v204 = vpack.c.bf16 %v186, %v186
  %v206 = vperm.slane %v203, 0
  %v224 = vunpack.c.l.b16 %v187
  %v225 = vunpack.c.l.b16 %v188
  %v226 = vunpack.c.l.b16 %v189
  %v227 = vunpack.c.l.b16 %v190
  %v228 = vunpack.c.l.b16 %v191
  %v229 = vunpack.c.l.b16 %v192
  %v230 = vunpack.c.l.b16 %v193
  %v231 = vunpack.c.l.b16 %v194
  %v232 = vunpack.c.l.b16 %v195
  %v233 = vunpack.c.l.b16 %v196
  %v234 = vunpack.c.l.b16 %v197
  %v235 = vunpack.c.l.b16 %v198
  %v236 = vunpack.c.l.b16 %v199
  %v237 = vunpack.c.l.b16 %v200
  %v238 = vunpack.c.l.b16 %v201
  %v239 = vunpack.c.l.b16 %v202
  %v240 = vpack.c.b16 %v225, %v224
  %v241 = vpack.c.b16 %v227, %v226
  %v242 = vpack.c.b16 %v229, %v228
  %v243 = vpack.c.b16 %v231, %v230
  %v244 = vpack.c.b16 %v233, %v232
  %v245 = vpack.c.b16 %v235, %v234
  %v246 = vpack.c.b16 %v237, %v236
  %v247 = vpack.c.b16 %v239, %v238
  %256 = vmatpush.bf16.msra.mxu0 %v247
  %257 = vmatpush.bf16.msra.mxu0 %v246
  %258 = vmatpush.bf16.msra.mxu0 %v245
  %259 = vmatpush.bf16.msra.mxu0 %v244
  %260 = vmatpush.bf16.msra.mxu0 %v243
  %261 = vmatpush.bf16.msra.mxu0 %v242
  %262 = vmatpush.bf16.msra.mxu0 %v241
  %263 = vmatpush.bf16.msra.mxu0 %v240
  %264 = vmatmul.bf16.gmra.mxu0 %v204
  %v265 = vpop.f32.mrf.mxu0
  %v266 = vadd.f32 %v206, %v265
  %v267 = vpop.f32.mrf.mxu0
  %268 = vdwg.mxu0
  %269 = vst [vmem:[%s5] sm:$0xff] %v266
  // Predicated region
  $region22: #{a_call__.5} parent=0 // pred_check
    _
  $region23: #{a_call__.5} parent=0 // pred_check_branch
    %271 = sbr.rel (0) target = $region25
  $region24: #{a_call__.5} parent=0 // pred_region
    _
  $region25: #{a_call__.5} parent=0 // pred_fallthru
    _
  // Predicated region
  $region26: #{a_call__.5} parent=0 // pred_check
    _
  $region27: #{a_call__.5} parent=0 // pred_check_branch
    %273 = sbr.rel (0) target = $region29
  $region28: #{a_call__.5} parent=0 // pred_region
    _
  $region29: #{a_call__.5} parent=0 // pred_fallthru
    _

</llo_original>
